<compile_context>
chip_gen: v6e
topology: v6e:2x2x1
jax: 0.10.0
libtpu: 0.0.40
codegen_flags: <defaults>
</compile_context>

<pallas_src>
import functools

import jax
import jax.numpy as jnp
from jax.experimental import pallas as pl
from jax.experimental.pallas import tpu as pltpu


def _cam_kernel(x_ref, w1_ref, w2_ref, o_ref, sum_acc, max_acc, *, inv_hw):
    # x_ref  : VMEM (B, C, T)   input tile (spatial dims flattened; lane-dense)
    # w1_ref : VMEM (C, Cr)     fc[0] 1x1-conv weight, transposed  (C -> Cr)
    # w2_ref : VMEM (Cr, C)     fc[2] 1x1-conv weight, transposed  (Cr -> C)
    # o_ref  : VMEM (B, 1, C)   sigmoid channel-attention weights
    # sum_acc: VMEM (B, C) f32  running spatial sum
    # max_acc: VMEM (B, C) f32  running spatial max
    hw = pl.program_id(1)

    @pl.when(hw == 0)
    def _init():
        sum_acc[...] = jnp.zeros_like(sum_acc)
        max_acc[...] = jnp.full_like(max_acc, -jnp.inf)

    x = x_ref[...]                                   # native dtype, no f32 copy
    sum_acc[...] += jnp.sum(x, axis=-1, dtype=jnp.float32)            # (B, C)
    max_acc[...] = jnp.maximum(max_acc[...],
                               jnp.max(x, axis=-1).astype(jnp.float32))

    @pl.when(hw == pl.num_programs(1) - 1)
    def _finalize():
        avg = sum_acc[...] * inv_hw                  # (B, C)
        mx = max_acc[...]                            # (B, C)
        b = avg.shape[0]
        pooled = jnp.concatenate([avg, mx], axis=0)  # (2B, C) — fused branches
        w1 = w1_ref[...].astype(jnp.float32)         # (C, Cr)
        w2 = w2_ref[...].astype(jnp.float32)         # (Cr, C)
        h = jnp.maximum(
            jnp.dot(pooled, w1, preferred_element_type=jnp.float32), 0.0)
        y = jnp.dot(h, w2, preferred_element_type=jnp.float32)        # (2B, C)
        out = jax.nn.sigmoid(y[:b] + y[b:])          # (B, C)
        o_ref[...] = out[:, None, :].astype(o_ref.dtype)


def _tpu_vmem_info():
    """Returns (physical VMEM bytes per TensorCore, TensorCores per chip)."""
    try:
        vmem_bytes = int(pltpu.get_tpu_info().vmem_capacity_bytes)
    except Exception:
        vmem_bytes = 64 * 1024 * 1024          # conservative fallback (v7x per-TC)
    # v7x: 64 MiB VMEM per TC and 2 TCs; v5e/v6e: 128 MiB and a single TC.
    num_tc = 2 if vmem_bytes <= 64 * 1024 * 1024 else 1
    return vmem_bytes, num_tc


def _choose_tiles(N, C, HW, itemsize, input_budget_bytes, num_tc):
    """Pick (batch block B, spatial tile T).

    Prefer a full-HW block (single reduction step per image) when it fits the
    double-buffered budget; otherwise tile the flattened spatial axis with the
    largest multiple of 128 that divides HW and fits.
    """
    max_block_bytes = max(input_budget_bytes // 2, 1)   # input is double-buffered
    per_image = C * HW * itemsize

    if per_image <= max_block_bytes:
        B = max(1, min(N, max_block_bytes // per_image))
        if num_tc > 1 and N > 1:
            # Keep >= 2 batch blocks so both TensorCores get work (v7x only).
            B = min(B, max(1, N // num_tc))
        while N % B != 0:
            B -= 1
        return max(B, 1), HW

    # A whole image does not fit: one image at a time, tile the spatial axis.
    per_col = C * itemsize                              # bytes per spatial column
    max_t = max(128, (max_block_bytes // per_col) // 128 * 128)
    best = None
    t = 128
    while t <= HW and t <= max_t:
        if HW % t == 0:
            best = t
        t += 128
    if best is None:
        # TODO(synk): HW not a multiple of 128 and too large for VMEM would need
        # masked remainder tiles (0 for sum, -inf for max); fall back to full HW.
        return 1, HW
    return 1, best


def channel_attention(x, w1, w2, *, batch_block=None, hw_tile=None):
    """x: (N, C, H, W); w1: (Cr, C, 1, 1) = fc[0].weight; w2: (C, Cr, 1, 1) = fc[2].weight."""
    N, C, H, W = x.shape
    Cr = w1.shape[0]
    HW = H * W

    # Free contiguous view + tiny weight prep; x itself is read exactly once.
    x_flat = x.reshape(N, C, HW)
    w1_mat = jnp.transpose(w1.reshape(Cr, C)).astype(jnp.float32)   # (C, Cr)
    w2_mat = jnp.transpose(w2.reshape(C, Cr)).astype(jnp.float32)   # (Cr, C)

    vmem_bytes, num_tc = _tpu_vmem_info()
    vmem_limit = (vmem_bytes * 3) // 4                    # scoped limit w/ headroom
    input_budget = max(vmem_limit - (4 << 20), 2 << 20)   # minus weights/scratch

    B, T = _choose_tiles(N, C, HW, x.dtype.itemsize, input_budget, num_tc)
    if batch_block is not None:
        assert N % batch_block == 0
        B = batch_block
    if hw_tile is not None:
        assert hw_tile == HW or (hw_tile % 128 == 0 and HW % hw_tile == 0)
        T = hw_tile

    grid = (N // B, HW // T)
    kernel = functools.partial(_cam_kernel, inv_hw=1.0 / HW)

    out = pl.pallas_call(
        kernel,
        out_shape=jax.ShapeDtypeStruct((N, 1, C), x.dtype),
        grid_spec=pltpu.PrefetchScalarGridSpec(
            num_scalar_prefetch=0,
            grid=grid,
            in_specs=[
                pl.BlockSpec((B, C, T), lambda n, h: (n, 0, h)),
                pl.BlockSpec((C, Cr), lambda n, h: (0, 0)),   # resident weights
                pl.BlockSpec((Cr, C), lambda n, h: (0, 0)),
            ],
            out_specs=pl.BlockSpec((B, 1, C), lambda n, h: (n, 0, 0)),
            scratch_shapes=[
                pltpu.VMEM((B, C), jnp.float32),   # running spatial sum
                pltpu.VMEM((B, C), jnp.float32),   # running spatial max
            ],
        ),
        compiler_params=pltpu.CompilerParams(
            dimension_semantics=("parallel", "arbitrary"),
            vmem_limit_bytes=int(vmem_limit),
        ),
    )(x_flat, w1_mat, w2_mat)

    return out.reshape(N, C, 1, 1)


def reference(x, w1, w2):
    """Pure-JAX reference mirroring the PyTorch forward."""
    avg = jnp.mean(x, axis=(2, 3), keepdims=True)
    mx = jnp.max(x, axis=(2, 3), keepdims=True)

    def fc(v):
        h = jax.lax.conv_general_dilated(
            v, w1, (1, 1), "VALID",
            dimension_numbers=("NCHW", "OIHW", "NCHW"))
        h = jnp.maximum(h, 0.0)
        return jax.lax.conv_general_dilated(
            h, w2, (1, 1), "VALID",
            dimension_numbers=("NCHW", "OIHW", "NCHW"))

    return jax.nn.sigmoid(fc(avg) + fc(mx))


if __name__ == "__main__":
    key = jax.random.PRNGKey(0)
    kx, k1, k2 = jax.random.split(key, 3)

    N, C, H, W = 2, 8, 16, 16
    reduction = 4
    Cr = C // reduction

    x = jax.random.normal(kx, (N, C, H, W), dtype=jnp.float32)
    # Deterministic synthetic conv weights (both 1x1, no bias), PyTorch OIHW layout.
    w1 = 0.3 * jax.random.normal(k1, (Cr, C, 1, 1), dtype=jnp.float32)  # fc[0].weight
    w2 = 0.3 * jax.random.normal(k2, (C, Cr, 1, 1), dtype=jnp.float32)  # fc[2].weight

    ref = reference(x, w1, w2)

    # 1) Auto-tiled path (whole image fits VMEM: single reduction step per image).
    out = jax.block_until_ready(channel_attention(x, w1, w2))
    assert out.shape == (N, C, 1, 1)
    assert jnp.allclose(out, ref, atol=1e-5, rtol=1e-5), "auto-tiled mismatch"

    # 2) Forced spatial tiling: exercises the hw-reduction grid axis
    #    (accumulator init / finalize across multiple grid steps).
    out_tiled = jax.block_until_ready(
        channel_attention(x, w1, w2, batch_block=1, hw_tile=128))
    assert jnp.allclose(out_tiled, ref, atol=1e-5, rtol=1e-5), "hw-tiled mismatch"

    print("KERNEL_OK")
</pallas_src>

<mosaic_0001>
module attributes {stable_mosaic.version = 11 : i64} {
  func.func @_cam_kernel(%arg0: i32, %arg1: i32, %arg2: memref<1x8x256xf32, #tpu.memory_space<vmem>>, %arg3: memref<8x2xf32, #tpu.memory_space<vmem>>, %arg4: memref<2x8xf32, #tpu.memory_space<vmem>>, %arg5: memref<1x1x8xf32, #tpu.memory_space<vmem>>, %arg6: memref<1x8xf32, #tpu.memory_space<vmem>>, %arg7: memref<1x8xf32, #tpu.memory_space<vmem>>) attributes {dimension_semantics = [#tpu.dimension_semantics<parallel>, #tpu.dimension_semantics<arbitrary>], iteration_bounds = array<i64: 2, 1>, scalar_prefetch = 0 : i64, scratch_operands = 2 : i64, tpu.core_type = #tpu.core_type<tc>, window_params = [{transform_indices = @transform_0, window_bounds = array<i64: 1, 8, 256>}, {pipeline_mode = #tpu.pipeline_mode<synchronous>, transform_indices = @transform_1, window_bounds = array<i64: 8, 2>}, {pipeline_mode = #tpu.pipeline_mode<synchronous>, transform_indices = @transform_2, window_bounds = array<i64: 2, 8>}, {transform_indices = @transform_3, window_bounds = array<i64: 1, 1, 8>}]} {
    %c0_i32 = arith.constant 0 : i32
    %0 = arith.cmpi eq, %arg1, %c0_i32 : i32
    %1 = arith.extui %0 : i1 to i32
    %c0_i32_0 = arith.constant 0 : i32
    %2 = arith.cmpi ne, %1, %c0_i32_0 : i32
    scf.if %2 {
      %cst_14 = arith.constant 0.000000e+00 : f32
      %15 = vector.broadcast %cst_14 : f32 to vector<1x8xf32>
      %c0_15 = arith.constant 0 : index
      %c0_16 = arith.constant 0 : index
      %16 = vector.load %arg6[%c0_15, %c0_16] : memref<1x8xf32, #tpu.memory_space<vmem>>, vector<1x8xf32>
      tpu.vector_store %arg6[%c0_15, %c0_16], %15 {strides = array<i32>} : memref<1x8xf32, #tpu.memory_space<vmem>>, vector<1x8xf32>,
      %cst_17 = arith.constant 0xFF800000 : f32
      %17 = vector.broadcast %cst_17 : f32 to vector<1x8xf32>
      %c0_18 = arith.constant 0 : index
      %c0_19 = arith.constant 0 : index
      %18 = vector.load %arg7[%c0_18, %c0_19] : memref<1x8xf32, #tpu.memory_space<vmem>>, vector<1x8xf32>
      tpu.vector_store %arg7[%c0_18, %c0_19], %17 {strides = array<i32>} : memref<1x8xf32, #tpu.memory_space<vmem>>, vector<1x8xf32>,
    } else {
    }
    %c0 = arith.constant 0 : index
    %c0_1 = arith.constant 0 : index
    %c0_2 = arith.constant 0 : index
    %3 = vector.load %arg2[%c0, %c0_1, %c0_2] : memref<1x8x256xf32, #tpu.memory_space<vmem>>, vector<1x8x256xf32>
    %c0_3 = arith.constant 0 : index
    %c0_4 = arith.constant 0 : index
    %4 = vector.load %arg6[%c0_3, %c0_4] : memref<1x8xf32, #tpu.memory_space<vmem>>, vector<1x8xf32>
    %cst = arith.constant dense<0.000000e+00> : vector<1x8xf32>
    %5 = vector.multi_reduction <add>, %3, %cst [2] : vector<1x8x256xf32> to vector<1x8xf32>
    %6 = arith.addf %4, %5 : vector<1x8xf32>
    %c0_5 = arith.constant 0 : index
    %c0_6 = arith.constant 0 : index
    %7 = vector.load %arg6[%c0_5, %c0_6] : memref<1x8xf32, #tpu.memory_space<vmem>>, vector<1x8xf32>
    tpu.vector_store %arg6[%c0_5, %c0_6], %6 {strides = array<i32>} : memref<1x8xf32, #tpu.memory_space<vmem>>, vector<1x8xf32>,
    %c0_7 = arith.constant 0 : index
    %c0_8 = arith.constant 0 : index
    %8 = vector.load %arg7[%c0_7, %c0_8] : memref<1x8xf32, #tpu.memory_space<vmem>>, vector<1x8xf32>
    %cst_9 = arith.constant dense<0xFF800000> : vector<1x8xf32>
    %9 = vector.multi_reduction <maximumf>, %3, %cst_9 [2] : vector<1x8x256xf32> to vector<1x8xf32>
    %10 = arith.maximumf %8, %9 : vector<1x8xf32>
    %c0_10 = arith.constant 0 : index
    %c0_11 = arith.constant 0 : index
    %11 = vector.load %arg7[%c0_10, %c0_11] : memref<1x8xf32, #tpu.memory_space<vmem>>, vector<1x8xf32>
    tpu.vector_store %arg7[%c0_10, %c0_11], %10 {strides = array<i32>} : memref<1x8xf32, #tpu.memory_space<vmem>>, vector<1x8xf32>,
    %c0_i32_12 = arith.constant 0 : i32
    %12 = arith.cmpi eq, %arg1, %c0_i32_12 : i32
    %13 = arith.extui %12 : i1 to i32
    %c0_i32_13 = arith.constant 0 : i32
    %14 = arith.cmpi ne, %13, %c0_i32_13 : i32
    scf.if %14 {
      %c0_14 = arith.constant 0 : index
      %c0_15 = arith.constant 0 : index
      %15 = vector.load %arg6[%c0_14, %c0_15] : memref<1x8xf32, #tpu.memory_space<vmem>>, vector<1x8xf32>
      %cst_16 = arith.constant 3.906250e-03 : f32
      %16 = vector.broadcast %cst_16 : f32 to vector<1x8xf32>
      %17 = arith.mulf %15, %16 : vector<1x8xf32>
      %c0_17 = arith.constant 0 : index
      %c0_18 = arith.constant 0 : index
      %18 = vector.load %arg7[%c0_17, %c0_18] : memref<1x8xf32, #tpu.memory_space<vmem>>, vector<1x8xf32>
      %19 = tpu.concatenate %17, %18 in 0 : vector<1x8xf32>, vector<1x8xf32> -> vector<2x8xf32>
      %c0_19 = arith.constant 0 : index
      %c0_20 = arith.constant 0 : index
      %20 = vector.load %arg3[%c0_19, %c0_20] : memref<8x2xf32, #tpu.memory_space<vmem>>, vector<8x2xf32>
      %c0_21 = arith.constant 0 : index
      %c0_22 = arith.constant 0 : index
      %21 = vector.load %arg4[%c0_21, %c0_22] : memref<2x8xf32, #tpu.memory_space<vmem>>, vector<2x8xf32>
      %cst_23 = arith.constant dense<0.000000e+00> : vector<2x2xf32>
      %22 = tpu.matmul %19, %20, %cst_23 {dimension_numbers = #tpu.dot_dimension_numbers<[1], [0], [0], [1], [0, 0, 1, 1], [], []>} : vector<2x8xf32>, vector<8x2xf32>, vector<2x2xf32> -> vector<2x2xf32>
      %cst_24 = arith.constant 0.000000e+00 : f32
      %23 = vector.broadcast %cst_24 : f32 to vector<2x2xf32>
      %24 = arith.maximumf %22, %23 : vector<2x2xf32>
      %cst_25 = arith.constant dense<0.000000e+00> : vector<2x8xf32>
      %25 = tpu.matmul %24, %21, %cst_25 {dimension_numbers = #tpu.dot_dimension_numbers<[1], [0], [0], [1], [0, 0, 1, 1], [], []>} : vector<2x2xf32>, vector<2x8xf32>, vector<2x8xf32> -> vector<2x8xf32>
      %26 = vector.extract_strided_slice %25 {offsets = [0, 0], sizes = [1, 8], strides = [1, 1]} : vector<2x8xf32> to vector<1x8xf32>
      %27 = vector.extract_strided_slice %25 {offsets = [1, 0], sizes = [1, 8], strides = [1, 1]} : vector<2x8xf32> to vector<1x8xf32>
      %28 = arith.addf %26, %27 : vector<1x8xf32>
      %29 = arith.negf %28 : vector<1x8xf32>
      %30 = math.exp %29 : vector<1x8xf32>
      %cst_26 = arith.constant 1.000000e+00 : f32
      %31 = vector.broadcast %cst_26 : f32 to vector<1x8xf32>
      %32 = arith.addf %31, %30 : vector<1x8xf32>
      %33 = arith.divf %31, %32 : vector<1x8xf32>
      %34 = vector.shape_cast %33 : vector<1x8xf32> to vector<1x1x8xf32>
      %c0_27 = arith.constant 0 : index
      %c0_28 = arith.constant 0 : index
      %c0_29 = arith.constant 0 : index
      %35 = vector.load %arg5[%c0_27, %c0_28, %c0_29] : memref<1x1x8xf32, #tpu.memory_space<vmem>>, vector<1x1x8xf32>
      tpu.vector_store %arg5[%c0_27, %c0_28, %c0_29], %34 {strides = array<i32>} : memref<1x1x8xf32, #tpu.memory_space<vmem>>, vector<1x1x8xf32>,
    } else {
    }
    return
  }
  func.func @transform_0(%arg0: i32, %arg1: i32) -> (i32, i32, i32) {
    %c0_i32 = arith.constant 0 : i32
    %c0_i32_0 = arith.constant 0 : i32
    return %arg0, %c0_i32, %arg1 : i32, i32, i32
  }
  func.func @transform_1(%arg0: i32, %arg1: i32) -> (i32, i32) {
    %c0_i32 = arith.constant 0 : i32
    %c0_i32_0 = arith.constant 0 : i32
    %c0_i32_1 = arith.constant 0 : i32
    return %c0_i32, %c0_i32_0 : i32, i32
  }
  func.func @transform_2(%arg0: i32, %arg1: i32) -> (i32, i32) {
    %c0_i32 = arith.constant 0 : i32
    %c0_i32_0 = arith.constant 0 : i32
    %c0_i32_1 = arith.constant 0 : i32
    return %c0_i32, %c0_i32_0 : i32, i32
  }
  func.func @transform_3(%arg0: i32, %arg1: i32) -> (i32, i32, i32) {
    %c0_i32 = arith.constant 0 : i32
    %c0_i32_0 = arith.constant 0 : i32
    %c0_i32_1 = arith.constant 0 : i32
    return %arg0, %c0_i32, %c0_i32_0 : i32, i32, i32
  }
}

</mosaic_0001>

<llo_original>
// kernel: tpu_custom_call.1
$region0: #{tpu_custom_call.1}
  #allocation0 [shape = 'u32[]', space=smem, size = 0x4, offset = 0x4, fixed_abs, tag = 'smem constant byte address 0x4 - core index']
  #allocation1 [shape = 'u32[144,128]{1,0:T(1,128)}', space=vmem, size = 0x12000, scoped, tag = 'internal scratch']
  #allocation2 [shape = 'f32[1,8]{1,0:T(1,128)}', space=vmem, size = 0x200, scoped, tag = 'scratch operand']
  #allocation3 [shape = 'f32[1,8]{1,0:T(1,128)}', space=vmem, size = 0x200, scoped, tag = 'scratch operand']
  %s0 = inlined_call_operand.hbm [shape: f32[2,8,256], index: 0, kind: input, shape index: {}]
  %s1 = inlined_call_operand.vmem [shape: f32[8,2], index: 1, kind: input, shape index: {}]
  %s2 = inlined_call_operand.vmem [shape: f32[2,8], index: 2, kind: input, shape index: {}]
  %s3 = inlined_call_operand.hbm [shape: f32[2,1,8], index: 3, kind: output, shape index: {}]
  %s4 = sld [smem:[#allocation0]]
  $region57: #{tpu_custom_call.1} parent=0
    _
  %s6 = ssub.s32 1, %s4
  %s7 = scalar_select 0, %s6, %s4
  $region1: #{tpu_custom_call.1} parent=0
    #allocation4 [shape = 'u8[16384]{0}', space=vmem, size = 0x4000, scoped, tag = 'input window, operand 0']
    #allocation5 [shape = 's32[2]{0}', space=sflag, size = 0x8, scoped, tag = 'scoped memory for tpu_custom_call.1']
    #allocation6 [shape = 's32[2]{0}', space=sflag, size = 0x8, scoped, tag = 'scoped memory for tpu_custom_call.1']
    #allocation7 [shape = 'u8[1024]{0}', space=vmem, size = 0x400, scoped, tag = 'output window, operand 0']
    %8 = vsyncpa [#allocation5], 0
    %s9 = scalar_lea.sflag [#allocation5], 1
    %10 = vsyncpa %s9, 0
    %11 = vsyncpa [#allocation6], 0
    %s12 = scalar_lea.sflag [#allocation6], 1
    %13 = vsyncpa %s12, 0
    loop: start=0, step=1, limit=4
    $region2: #{tpu_custom_call.1} parent=1 // loop_pre_header
      _
    $region3: #{tpu_custom_call.1} parent=1 // loop_header
      %s15 = sphi 0, %s19
      %p16 = scmp.ge.s32.totalorder %s15, 4
      %s22 = sphi 0, %s34
      %s23 = sphi 0, %s30
      %s24 = sphi 0, %s22
      %s25 = sphi 0, %s23
      %s26 = sphi 0, %s24
      %s27 = sphi 0, %s25
      %s39 = sphi 0, %s41
      %s42 = sphi 0, %s39
      %s43 = sphi 0, %s42
      %s59 = sphi 0, %s43
      %s63 = sphi 0, %s63
      %s65 = sphi 0, %s63
      %s66 = sphi 0, %s65
      %s80 = sphi 0, %s66
      %s84 = sphi 0, %s84
      %s86 = sphi 0, %s84
      %s87 = sphi 0, %s86
      %s101 = sphi 0, %s87
      %s107 = sphi 0, %s109
      %s110 = sphi 0, %s107
      %s111 = sphi 0, %s110
      %s127 = sphi 0, %s111
    $region4: #{tpu_custom_call.1} parent=1 // loop_header_branch
      %18 = sbr.rel (%p16) target = $region8
    $region5: #{tpu_custom_call.1} parent=1 // loop_body
      %s20 = ssub.s32 %s15, 1
      %s21 = ssub.s32 %s15, 2
      %s28 = sadd.s32 1, %s23
      %p29 = scmp.ge.s32.totalorder %s28, 1
      %s30 = scalar_select %p29, 0, %s28
      %s31 = sadd.s32 1, %s22
      %s32 = scalar_select %p29, %s31, %s22
      %p33 = scmp.ge.s32.totalorder %s32, 2
      %s34 = scalar_select %p33, 0, %s32
      %s35 = ssub.s32 %s22, %s34
      %s36 = ssub.s32 %s23, %s30
      %s37 = sor.u32 %s35, %s36
      %p38 = scmp.eq.s32.totalorder %s37, 0
      %s40 = sadd.s32 %s39, 1
      %s41 = scalar_select %p38, %s39, %s40
      %p44 = pneg %p38
      %p45 = scmp.eq.s32.totalorder %s15, 1
      %p46 = por %p44, %p45
      %p47 = scmp.ne.s32.totalorder %s39, %s42
      %p48 = scmp.eq.s32.totalorder %s15, 0
      %p49 = por %p47, %p48
      %p50 = scmp.ne.s32.totalorder %s39, %s42
      %p51 = scmp.eq.s32.totalorder %s20, 1
      %p52 = por %p50, %p51
      %p53 = scmp.ne.s32.totalorder %s42, %s43
      %p54 = scmp.eq.s32.totalorder %s20, 0
      %p55 = por %p53, %p54
      %p56 = scmp.ne.s32.totalorder %s42, %s43
      %p57 = scmp.eq.s32.totalorder %s21, 1
      %p58 = por %p56, %p57
      %p60 = scmp.ne.s32.totalorder %s43, %s59
      %p61 = scmp.eq.s32.totalorder %s21, 0
      %p62 = por %p60, %p61
      %s64 = sadd.s32 %s63, 1
      %p67 = scmp.eq.s32.totalorder %s15, 1
      %p68 = scmp.ne.s32.totalorder %s63, %s65
      %p69 = scmp.eq.s32.totalorder %s15, 0
      %p70 = por %p68, %p69
      %p71 = scmp.ne.s32.totalorder %s63, %s65
      %p72 = scmp.eq.s32.totalorder %s20, 1
      %p73 = por %p71, %p72
      %p74 = scmp.ne.s32.totalorder %s65, %s66
      %p75 = scmp.eq.s32.totalorder %s20, 0
      %p76 = por %p74, %p75
      %p77 = scmp.ne.s32.totalorder %s65, %s66
      %p78 = scmp.eq.s32.totalorder %s21, 1
      %p79 = por %p77, %p78
      %p81 = scmp.ne.s32.totalorder %s66, %s80
      %p82 = scmp.eq.s32.totalorder %s21, 0
      %p83 = por %p81, %p82
      %s85 = sadd.s32 %s84, 1
      %p88 = scmp.eq.s32.totalorder %s15, 1
      %p89 = scmp.ne.s32.totalorder %s84, %s86
      %p90 = scmp.eq.s32.totalorder %s15, 0
      %p91 = por %p89, %p90
      %p92 = scmp.ne.s32.totalorder %s84, %s86
      %p93 = scmp.eq.s32.totalorder %s20, 1
      %p94 = por %p92, %p93
      %p95 = scmp.ne.s32.totalorder %s86, %s87
      %p96 = scmp.eq.s32.totalorder %s20, 0
      %p97 = por %p95, %p96
      %p98 = scmp.ne.s32.totalorder %s86, %s87
      %p99 = scmp.eq.s32.totalorder %s21, 1
      %p100 = por %p98, %p99
      %p102 = scmp.ne.s32.totalorder %s87, %s101
      %p103 = scmp.eq.s32.totalorder %s21, 0
      %p104 = por %p102, %p103
      %s105 = ssub.s32 %s22, %s34
      %p106 = scmp.eq.s32.totalorder %s105, 0
      %s108 = sadd.s32 %s107, 1
      %s109 = scalar_select %p106, %s107, %s108
      %p112 = pneg %p106
      %p113 = scmp.eq.s32.totalorder %s15, 1
      %p114 = por %p112, %p113
      %p115 = scmp.ne.s32.totalorder %s107, %s110
      %p116 = scmp.eq.s32.totalorder %s15, 0
      %p117 = por %p115, %p116
      %p118 = scmp.ne.s32.totalorder %s107, %s110
      %p119 = scmp.eq.s32.totalorder %s20, 1
      %p120 = por %p118, %p119
      %p121 = scmp.ne.s32.totalorder %s110, %s111
      %p122 = scmp.eq.s32.totalorder %s20, 0
      %p123 = por %p121, %p122
      %p124 = scmp.ne.s32.totalorder %s110, %s111
      %p125 = scmp.eq.s32.totalorder %s21, 1
      %p126 = por %p124, %p125
      %p128 = scmp.ne.s32.totalorder %s111, %s127
      %p129 = scmp.eq.s32.totalorder %s21, 0
      %p130 = por %p128, %p129
      %p131 = scmp.le.s32.totalorder 1, %s15
      %p132 = scmp.lt.s32.totalorder %s15, 3
      %p133 = pnand %p131, %p132
      %p134 = pneg %p133
      // Predicated region
      $region9: #{tpu_custom_call.1} parent=5 // pred_check
        _
      $region10: #{tpu_custom_call.1} parent=5 // pred_check_branch
        %136 = sbr.rel (%p133) target = $region12
      $region11: #{tpu_custom_call.1} parent=5 // pred_region
        %s137 = ssub.s32 %s15, 1
        // Predicated region
        $region13: #{tpu_custom_call.1} parent=11 // pred_check
          %p138 = pneg %p76
        $region14: #{tpu_custom_call.1} parent=11 // pred_check_branch
          %140 = sbr.rel (%p138) target = $region16
        $region15: #{tpu_custom_call.1} parent=11 // pred_region
          _
        $region16: #{tpu_custom_call.1} parent=11 // pred_fallthru
          _
        // Predicated region
        $region17: #{tpu_custom_call.1} parent=11 // pred_check
          %p141 = pneg %p97
        $region18: #{tpu_custom_call.1} parent=11 // pred_check_branch
          %143 = sbr.rel (%p141) target = $region20
        $region19: #{tpu_custom_call.1} parent=11 // pred_region
          _
        $region20: #{tpu_custom_call.1} parent=11 // pred_fallthru
          _
      $region12: #{tpu_custom_call.1} parent=5 // pred_fallthru
        _
      %p144 = scmp.lt.s32.totalorder %s15, 2
      // Predicated region
      $region21: #{tpu_custom_call.1} parent=5 // pred_check
        %p145 = pneg %p144
      $region22: #{tpu_custom_call.1} parent=5 // pred_check_branch
        %147 = sbr.rel (%p145) target = $region24
      $region23: #{tpu_custom_call.1} parent=5 // pred_region
        // Predicated region
        $region25: #{tpu_custom_call.1} parent=23 // pred_check
          %p148 = pneg %p49
        $region26: #{tpu_custom_call.1} parent=23 // pred_check_branch
          %150 = sbr.rel (%p148) target = $region28
        $region27: #{tpu_custom_call.1} parent=23 // pred_region
          %s151 = sand.u32 %s39, 1
          %s152 = scalar_lea.sflag [#allocation5], %s151
          %s153 = sand.u32 %s39, 1
          %s154 = smul.addr %s153, 16
          %s155 = scalar_lea.vmem [#allocation4], %s154
          %s156 = smul.u32 2, %s23
          %s158 = ssub.s32 256, 256
          %159 = vsyncadd %s152, %s158
          %s160 = smul.addr %s22, 2
          %s161 = sadd.s32 %s156, %s160
          %s162 = smul.addr %s161, 128
          %s163 = scalar_lea.hbm %s0, %s162
          %s165 = sshll.u32 %s155, 4
          %s166 = int_to_ptr.vmem [resolvable:$true] %s165
          %168 = dma.hbm_to_vmem [thread:$0]  %s163, 256, %s166, %s152
        $region28: #{tpu_custom_call.1} parent=23 // pred_fallthru
          _
      $region24: #{tpu_custom_call.1} parent=5 // pred_fallthru
        _
      %p169 = scmp.le.s32.totalorder 1, %s15
      %p170 = scmp.lt.s32.totalorder %s15, 3
      %p171 = pnand %p169, %p170
      %p172 = pneg %p171
      // Predicated region
      $region29: #{tpu_custom_call.1} parent=5 // pred_check
        _
      $region30: #{tpu_custom_call.1} parent=5 // pred_check_branch
        %174 = sbr.rel (%p171) target = $region32
      $region31: #{tpu_custom_call.1} parent=5 // pred_region
        %s175 = ssub.s32 %s15, 1
        %s176 = sand.u32 %s42, 1
        %s177 = scalar_lea.sflag [#allocation5], %s176
        %s178 = sand.u32 %s42, 1
        %s179 = smul.addr %s178, 16
        %s180 = scalar_lea.vmem [#allocation4], %s179
        // Predicated region
        $region33: #{tpu_custom_call.1} parent=31 // pred_check
          %p181 = pneg %p55
        $region34: #{tpu_custom_call.1} parent=31 // pred_check_branch
          %183 = sbr.rel (%p181) target = $region36
        $region35: #{tpu_custom_call.1} parent=31 // pred_region
          %184 = dma.done %s177, 256
        $region36: #{tpu_custom_call.1} parent=31 // pred_fallthru
          _
        %s185 = sand.u32 %s42, 1
        %s186 = scalar_lea.sflag [#allocation5], %s185
        %s187 = sand.u32 %s42, 1
        %s188 = smul.addr %s187, 16
        %s189 = scalar_lea.vmem [#allocation4], %s188
        %p190 = pneg %p55
        %p191 = pneg %p52
        %p192 = pneg %p76
        %p193 = pneg %p73
        %p194 = pneg %p97
        %p195 = pneg %p94
        %p196 = pneg %p123
        %p197 = pneg %p120
        %s198 = sand.u32 %s110, 1
        %s199 = scalar_lea.sflag [#allocation6], %s198
        %s200 = sand.u32 %s110, 1
        %s201 = scalar_lea.vmem [#allocation7], %s200
        %s202 = smul.u32 2, %s25
        %p203 = scmp.eq.s32.totalorder %s25, 0
        // Predicated region
        $region37: #{tpu_custom_call.1} parent=31 // pred_check
          %p204 = pneg %p203
        $region38: #{tpu_custom_call.1} parent=31 // pred_check_branch
          %206 = sbr.rel (%p204) target = $region40
        $region39: #{tpu_custom_call.1} parent=31 // pred_region
          %vm207 = vcmask 57344
          %208 = vst.msk [vmem:[#allocation2] sm:$0x1] %vm207, 0.0
          %209 = vst.msk [vmem:[#allocation3] sm:$0x1] %vm207, -inf
        $region40: #{tpu_custom_call.1} parent=31 // pred_fallthru
          _
        %v210 = vld [vmem:[%s180] sm:$0xff]
        %v211 = vld [vmem:[%s180 + $0x8] sm:$0xff]
        %v212 = vld [vmem:[#allocation2] sm:$0x1]
        %v213 = vadd.f32 %v210, %v211
        %214 = vadd.xlane.f32.xlu0 %v213
        %v215 = vpop.xlane.xlu0 %214
        %v217 = vlaneseq
        %v218 = vshrl.u32 %v217, 7
        %v219 = vsub.s32 0, %v218
        %v220 = vrot.slane %v215, %v219
        %v221 = vlaneseq
        %v222 = vshrl.u32 %v221, 7
        %v223 = vsub.s32 1, %v222
        %v224 = vrot.slane %v215, %v223
        %v225 = vlaneseq
        %v226 = vshrl.u32 %v225, 7
        %v227 = vsub.s32 2, %v226
        %v228 = vrot.slane %v215, %v227
        %v229 = vlaneseq
        %v230 = vshrl.u32 %v229, 7
        %v231 = vsub.s32 3, %v230
        %v232 = vrot.slane %v215, %v231
        %v233 = vlaneseq
        %v234 = vshrl.u32 %v233, 7
        %v235 = vsub.s32 4, %v234
        %v236 = vrot.slane %v215, %v235
        %v237 = vlaneseq
        %v238 = vshrl.u32 %v237, 7
        %v239 = vsub.s32 5, %v238
        %v240 = vrot.slane %v215, %v239
        %v241 = vlaneseq
        %v242 = vshrl.u32 %v241, 7
        %v243 = vsub.s32 6, %v242
        %v244 = vrot.slane %v215, %v243
        %v245 = vlaneseq
        %v246 = vshrl.u32 %v245, 7
        %v247 = vsub.s32 7, %v246
        %v248 = vrot.slane %v215, %v247
        %v249 = vcombine.low %v220, %v224
        %v250 = vcombine.low %v228, %v232
        %v251 = vcombine.low %v236, %v240
        %v252 = vcombine.low %v244, %v248
        %v254 = vunpack.c.l.s4 1966171168
        %v255 = vunpack.c.0.s8 %v254
        %v256 = vlaneseq
        %v257 = vshrl.u32 %v256, 7
        %v258 = vsub.s32 %v255, %v257
        %v259 = vrot.slane %v249, %v258
        %v261 = vunpack.c.l.s4 1966171168
        %v262 = vunpack.c.0.s8 %v261
        %v263 = vlaneseq
        %v264 = vshrl.u32 %v263, 7
        %v265 = vsub.s32 %v262, %v264
        %v266 = vrot.slane %v250, %v265
        %v268 = vunpack.c.l.s4 1966171168
        %v269 = vunpack.c.0.s8 %v268
        %v270 = vlaneseq
        %v271 = vshrl.u32 %v270, 7
        %v272 = vsub.s32 %v269, %v271
        %v273 = vrot.slane %v251, %v272
        %v275 = vunpack.c.l.s4 1966171168
        %v276 = vunpack.c.0.s8 %v275
        %v277 = vlaneseq
        %v278 = vshrl.u32 %v277, 7
        %v279 = vsub.s32 %v276, %v278
        %v280 = vrot.slane %v252, %v279
        %v281 = vcombine.low %v259, %v266
        %v282 = vcombine.low %v273, %v280
        %v284 = vunpack.c.l.s4 1966171168
        %v285 = vunpack.c.0.s8 %v284
        %v286 = vlaneseq
        %v287 = vshrl.u32 %v286, 7
        %v288 = vsub.s32 %v285, %v287
        %v289 = vrot.slane %v281, %v288
        %v291 = vunpack.c.l.s4 1966171168
        %v292 = vunpack.c.0.s8 %v291
        %v293 = vlaneseq
        %v294 = vshrl.u32 %v293, 7
        %v295 = vsub.s32 %v292, %v294
        %v296 = vrot.slane %v282, %v295
        %v297 = vcombine.low %v289, %v296
        %298 = vset.pattern.permute.xlu0 0
        %299 = vperm.xlu0 %298, %v297
        %v300 = vpop.permute.xlu0 %299
        %v301 = vlaneseq
        %v302 = vand.u32 %v301, 127
        %v303 = vlaneseq
        %v304 = vshrl.u32 %v303, 7
        %v305 = vsub.s32 %v302, %v304
        %v306 = vrot.slane %v300, %v305
        %v308 = vunpack.c.l.s4 1966171168
        %v309 = vunpack.c.0.s8 %v308
        %v310 = vlaneseq
        %v311 = vshrl.u32 %v310, 7
        %v312 = vsub.s32 %v309, %v311
        %v313 = vrot.slane %v306, %v312
        %v315 = vunpack.c.l.s4 1966171168
        %v316 = vunpack.c.0.s8 %v315
        %v317 = vlaneseq
        %v318 = vshrl.u32 %v317, 7
        %v319 = vsub.s32 %v316, %v318
        %v320 = vrot.slane %v313, %v319
        %v322 = vadd.f32 %v212, %v320
        %vm323 = vcmask 57344
        %324 = vst.msk [vmem:[#allocation2] sm:$0x1] %vm323, %v322
        %v325 = vld [vmem:[#allocation3] sm:$0x1]
        %v326 = vmax.f32 %v210, %v211
        %327 = vmax.xlane.f32.xlu0 %v326
        %v328 = vpop.xlane.xlu0 %327
        %v330 = vlaneseq
        %v331 = vshrl.u32 %v330, 7
        %v332 = vsub.s32 0, %v331
        %v333 = vrot.slane %v328, %v332
        %v334 = vlaneseq
        %v335 = vshrl.u32 %v334, 7
        %v336 = vsub.s32 1, %v335
        %v337 = vrot.slane %v328, %v336
        %v338 = vlaneseq
        %v339 = vshrl.u32 %v338, 7
        %v340 = vsub.s32 2, %v339
        %v341 = vrot.slane %v328, %v340
        %v342 = vlaneseq
        %v343 = vshrl.u32 %v342, 7
        %v344 = vsub.s32 3, %v343
        %v345 = vrot.slane %v328, %v344
        %v346 = vlaneseq
        %v347 = vshrl.u32 %v346, 7
        %v348 = vsub.s32 4, %v347
        %v349 = vrot.slane %v328, %v348
        %v350 = vlaneseq
        %v351 = vshrl.u32 %v350, 7
        %v352 = vsub.s32 5, %v351
        %v353 = vrot.slane %v328, %v352
        %v354 = vlaneseq
        %v355 = vshrl.u32 %v354, 7
        %v356 = vsub.s32 6, %v355
        %v357 = vrot.slane %v328, %v356
        %v358 = vlaneseq
        %v359 = vshrl.u32 %v358, 7
        %v360 = vsub.s32 7, %v359
        %v361 = vrot.slane %v328, %v360
        %v362 = vcombine.low %v333, %v337
        %v363 = vcombine.low %v341, %v345
        %v364 = vcombine.low %v349, %v353
        %v365 = vcombine.low %v357, %v361
        %v367 = vunpack.c.l.s4 1966171168
        %v368 = vunpack.c.0.s8 %v367
        %v369 = vlaneseq
        %v370 = vshrl.u32 %v369, 7
        %v371 = vsub.s32 %v368, %v370
        %v372 = vrot.slane %v362, %v371
        %v374 = vunpack.c.l.s4 1966171168
        %v375 = vunpack.c.0.s8 %v374
        %v376 = vlaneseq
        %v377 = vshrl.u32 %v376, 7
        %v378 = vsub.s32 %v375, %v377
        %v379 = vrot.slane %v363, %v378
        %v381 = vunpack.c.l.s4 1966171168
        %v382 = vunpack.c.0.s8 %v381
        %v383 = vlaneseq
        %v384 = vshrl.u32 %v383, 7
        %v385 = vsub.s32 %v382, %v384
        %v386 = vrot.slane %v364, %v385
        %v388 = vunpack.c.l.s4 1966171168
        %v389 = vunpack.c.0.s8 %v388
        %v390 = vlaneseq
        %v391 = vshrl.u32 %v390, 7
        %v392 = vsub.s32 %v389, %v391
        %v393 = vrot.slane %v365, %v392
        %v394 = vcombine.low %v372, %v379
        %v395 = vcombine.low %v386, %v393
        %v397 = vunpack.c.l.s4 1966171168
        %v398 = vunpack.c.0.s8 %v397
        %v399 = vlaneseq
        %v400 = vshrl.u32 %v399, 7
        %v401 = vsub.s32 %v398, %v400
        %v402 = vrot.slane %v394, %v401
        %v404 = vunpack.c.l.s4 1966171168
        %v405 = vunpack.c.0.s8 %v404
        %v406 = vlaneseq
        %v407 = vshrl.u32 %v406, 7
        %v408 = vsub.s32 %v405, %v407
        %v409 = vrot.slane %v395, %v408
        %v410 = vcombine.low %v402, %v409
        %411 = vset.pattern.permute.xlu0 0
        %412 = vperm.xlu0 %411, %v410
        %v413 = vpop.permute.xlu0 %412
        %v414 = vlaneseq
        %v415 = vshrl.u32 %v414, 7
        %v416 = vsub.s32 %v302, %v415
        %v417 = vrot.slane %v413, %v416
        %v419 = vunpack.c.l.s4 1966171168
        %v420 = vunpack.c.0.s8 %v419
        %v421 = vlaneseq
        %v422 = vshrl.u32 %v421, 7
        %v423 = vsub.s32 %v420, %v422
        %v424 = vrot.slane %v417, %v423
        %v426 = vunpack.c.l.s4 1966171168
        %v427 = vunpack.c.0.s8 %v426
        %v428 = vlaneseq
        %v429 = vshrl.u32 %v428, 7
        %v430 = vsub.s32 %v427, %v429
        %v431 = vrot.slane %v424, %v430
        %v433 = vmax.f32 %v325, %v431
        %434 = vst.msk [vmem:[#allocation3] sm:$0x1] %vm323, %v433
        // Predicated region
        $region41: #{tpu_custom_call.1} parent=31 // pred_check
          %p435 = pneg %p203
        $region42: #{tpu_custom_call.1} parent=31 // pred_check_branch
          %437 = sbr.rel (%p435) target = $region44
        $region43: #{tpu_custom_call.1} parent=31 // pred_region
          %v438 = vld [vmem:[#allocation2] sm:$0x1]
          %v439 = vmul.f32 %v438, 0.00390625
          %v440 = vld [vmem:[#allocation3] sm:$0x1]
          %v442 = vlaneseq
          %v443 = vshrl.u32 %v442, 7
          %v444 = vsub.s32 0, %v443
          %v445 = vrot.slane %v440, %v444
          %vm447 = vcmask 1040384
          %v448 = vsel %vm447, %v439, %v445
          %v449 = vld [vmem:[%s1] sm:$0xff]
          %v450 = vld [vmem:[%s2] sm:$0x3]
          %vm451 = vcmask 64512
          %v453 = vsel %vm451, %v448, 0
          %455 = vmatprep.subr.mxu0 0.0
          %456 = vmatpush1.msra.mxu0 0.0
          %457 = vmatprep.subr.mxu0 0.0
          %458 = vmatpush1.msra.mxu0 0.0
          %459 = vmatprep.subr.mxu0 0.0
          %460 = vmatpush1.msra.mxu0 0.0
          %461 = vmatprep.subr.mxu0 0.0
          %462 = vmatpush1.msra.mxu0 0.0
          %463 = vmatprep.subr.mxu0 0.0
          %464 = vmatpush1.msra.mxu0 0.0
          %465 = vmatprep.subr.mxu0 0.0
          %466 = vmatpush1.msra.mxu0 0.0
          %467 = vmatprep.subr.mxu0 0.0
          %468 = vmatpush1.msra.mxu0 0.0
          %469 = vmatprep.subr.mxu0 0.0
          %470 = vmatpush1.msra.mxu0 0.0
          %471 = vmatprep.subr.mxu0 0.0
          %472 = vmatpush1.msra.mxu0 0.0
          %473 = vmatprep.subr.mxu0 0.0
          %474 = vmatpush1.msra.mxu0 0.0
          %475 = vmatprep.subr.mxu0 0.0
          %476 = vmatpush1.msra.mxu0 0.0
          %477 = vmatprep.subr.mxu0 0.0
          %478 = vmatpush1.msra.mxu0 0.0
          %479 = vmatprep.subr.mxu0 0.0
          %480 = vmatpush1.msra.mxu0 0.0
          %481 = vmatprep.subr.mxu0 0.0
          %482 = vmatpush1.msra.mxu0 0.0
          %483 = vmatprep.subr.mxu0 0.0
          %484 = vmatpush1.msra.mxu0 0.0
          %485 = vmatprep.subr.mxu0 0.0
          %486 = vmatpush1.msra.mxu0 %v449
          %487 = vmatprep.subr.mxu0 0.0
          %488 = vmatpush2.msra.mxu0 0.0
          %489 = vmatprep.subr.mxu0 0.0
          %490 = vmatpush2.msra.mxu0 0.0
          %491 = vmatprep.subr.mxu0 0.0
          %492 = vmatpush2.msra.mxu0 0.0
          %493 = vmatprep.subr.mxu0 0.0
          %494 = vmatpush2.msra.mxu0 0.0
          %495 = vmatprep.subr.mxu0 0.0
          %496 = vmatpush2.msra.mxu0 0.0
          %497 = vmatprep.subr.mxu0 0.0
          %498 = vmatpush2.msra.mxu0 0.0
          %499 = vmatprep.subr.mxu0 0.0
          %500 = vmatpush2.msra.mxu0 0.0
          %501 = vmatprep.subr.mxu0 0.0
          %502 = vmatpush2.msra.mxu0 0.0
          %503 = vmatprep.subr.mxu0 0.0
          %504 = vmatpush2.msra.mxu0 0.0
          %505 = vmatprep.subr.mxu0 0.0
          %506 = vmatpush2.msra.mxu0 0.0
          %507 = vmatprep.subr.mxu0 0.0
          %508 = vmatpush2.msra.mxu0 0.0
          %509 = vmatprep.subr.mxu0 0.0
          %510 = vmatpush2.msra.mxu0 0.0
          %511 = vmatprep.subr.mxu0 0.0
          %512 = vmatpush2.msra.mxu0 0.0
          %513 = vmatprep.subr.mxu0 0.0
          %514 = vmatpush2.msra.mxu0 0.0
          %515 = vmatprep.subr.mxu0 0.0
          %516 = vmatpush2.msra.mxu0 0.0
          %517 = vmatprep.subr.mxu0 0.0
          %518 = vmatpush2.msra.mxu0 0.0
          %519 = vmatprep.mubr.f32.mxu0 0.0
          %520 = vmatmul.mubr.f32.gmra.mxu0 %v453
          %v521 = vpop.f32.mrf.mxu0
          %v522 = vadd.f32 0.0, %v521
          %v523 = vpop.f32.mrf.mxu0
          %524 = vdwg.mxu0
          %v525 = vmax.f32 %v522, 0.0
          %vm526 = vcmask 15360
          %v528 = vsel %vm526, %v525, 0
          %vm530 = vcmask 1041408
          %v532 = vsel %vm530, %v450, 0
          %534 = vmatprep.subr.mxu0 0.0
          %535 = vmatpush1.msra.mxu0 0.0
          %536 = vmatprep.subr.mxu0 0.0
          %537 = vmatpush1.msra.mxu0 0.0
          %538 = vmatprep.subr.mxu0 0.0
          %539 = vmatpush1.msra.mxu0 0.0
          %540 = vmatprep.subr.mxu0 0.0
          %541 = vmatpush1.msra.mxu0 0.0
          %542 = vmatprep.subr.mxu0 0.0
          %543 = vmatpush1.msra.mxu0 0.0
          %544 = vmatprep.subr.mxu0 0.0
          %545 = vmatpush1.msra.mxu0 0.0
          %546 = vmatprep.subr.mxu0 0.0
          %547 = vmatpush1.msra.mxu0 0.0
          %548 = vmatprep.subr.mxu0 0.0
          %549 = vmatpush1.msra.mxu0 0.0
          %550 = vmatprep.subr.mxu0 0.0
          %551 = vmatpush1.msra.mxu0 0.0
          %552 = vmatprep.subr.mxu0 0.0
          %553 = vmatpush1.msra.mxu0 0.0
          %554 = vmatprep.subr.mxu0 0.0
          %555 = vmatpush1.msra.mxu0 0.0
          %556 = vmatprep.subr.mxu0 0.0
          %557 = vmatpush1.msra.mxu0 0.0
          %558 = vmatprep.subr.mxu0 0.0
          %559 = vmatpush1.msra.mxu0 0.0
          %560 = vmatprep.subr.mxu0 0.0
          %561 = vmatpush1.msra.mxu0 0.0
          %562 = vmatprep.subr.mxu0 0.0
          %563 = vmatpush1.msra.mxu0 0.0
          %564 = vmatprep.subr.mxu0 0.0
          %565 = vmatpush1.msra.mxu0 %v532
          %566 = vmatprep.subr.mxu0 0.0
          %567 = vmatpush2.msra.mxu0 0.0
          %568 = vmatprep.subr.mxu0 0.0
          %569 = vmatpush2.msra.mxu0 0.0
          %570 = vmatprep.subr.mxu0 0.0
          %571 = vmatpush2.msra.mxu0 0.0
          %572 = vmatprep.subr.mxu0 0.0
          %573 = vmatpush2.msra.mxu0 0.0
          %574 = vmatprep.subr.mxu0 0.0
          %575 = vmatpush2.msra.mxu0 0.0
          %576 = vmatprep.subr.mxu0 0.0
          %577 = vmatpush2.msra.mxu0 0.0
          %578 = vmatprep.subr.mxu0 0.0
          %579 = vmatpush2.msra.mxu0 0.0
          %580 = vmatprep.subr.mxu0 0.0
          %581 = vmatpush2.msra.mxu0 0.0
          %582 = vmatprep.subr.mxu0 0.0
          %583 = vmatpush2.msra.mxu0 0.0
          %584 = vmatprep.subr.mxu0 0.0
          %585 = vmatpush2.msra.mxu0 0.0
          %586 = vmatprep.subr.mxu0 0.0
          %587 = vmatpush2.msra.mxu0 0.0
          %588 = vmatprep.subr.mxu0 0.0
          %589 = vmatpush2.msra.mxu0 0.0
          %590 = vmatprep.subr.mxu0 0.0
          %591 = vmatpush2.msra.mxu0 0.0
          %592 = vmatprep.subr.mxu0 0.0
          %593 = vmatpush2.msra.mxu0 0.0
          %594 = vmatprep.subr.mxu0 0.0
          %595 = vmatpush2.msra.mxu0 0.0
          %596 = vmatprep.subr.mxu0 0.0
          %597 = vmatpush2.msra.mxu0 0.0
          %598 = vmatprep.mubr.f32.mxu0 0.0
          %599 = vmatmul.mubr.f32.gmra.mxu0 %v528
          %v600 = vpop.f32.mrf.mxu0
          %v601 = vadd.f32 0.0, %v600
          %v602 = vpop.f32.mrf.mxu0
          %603 = vdwg.mxu0
          %v605 = vrot.slane %v601, 1
          %v607 = vadd.f32 %v601, %v605
          %v608 = vxor.u32 %v607, 2147483648
          %v609 = vmul.f32 %v608, 1.442695
          %v610 = vpow.pop %v609
          %v611 = vadd.f32 %v610, 1.0
          %v612 = vrcp.pop %v611
          %v613 = vmul.f32 1.0, %v612
          %614 = vst.msk [vmem:[%s201] sm:$0x1] %vm323, %v613
        $region44: #{tpu_custom_call.1} parent=31 // pred_fallthru
          _
        %s615 = sand.u32 %s110, 1
        %s616 = scalar_lea.sflag [#allocation6], %s615
        %s617 = sand.u32 %s110, 1
        %s618 = scalar_lea.vmem [#allocation7], %s617
        // Predicated region
        $region45: #{tpu_custom_call.1} parent=31 // pred_check
          %p619 = pneg %p120
        $region46: #{tpu_custom_call.1} parent=31 // pred_check_branch
          %621 = sbr.rel (%p619) target = $region48
        $region47: #{tpu_custom_call.1} parent=31 // pred_region
          %s623 = ssub.s32 16, 16
          %624 = vsyncadd %s616, %s623
          %s625 = smul.addr %s24, 16
          %s626 = scalar_lea.hbm %s3, %s625
          %s628 = sshll.u32 %s618, 4
          %s629 = int_to_ptr.vmem [resolvable:$true] %s628
          %631 = dma.vmem_to_hbm [thread:$0]  %s629, 16, %s626, %s616
        $region48: #{tpu_custom_call.1} parent=31 // pred_fallthru
          _
      $region32: #{tpu_custom_call.1} parent=5 // pred_fallthru
        _
      %p632 = scmp.le.s32.totalorder 2, %s15
      // Predicated region
      $region49: #{tpu_custom_call.1} parent=5 // pred_check
        %p633 = pneg %p632
      $region50: #{tpu_custom_call.1} parent=5 // pred_check_branch
        %635 = sbr.rel (%p633) target = $region52
      $region51: #{tpu_custom_call.1} parent=5 // pred_region
        %s636 = ssub.s32 %s15, 2
        // Predicated region
        $region53: #{tpu_custom_call.1} parent=51 // pred_check
          %p637 = pneg %p126
        $region54: #{tpu_custom_call.1} parent=51 // pred_check_branch
          %639 = sbr.rel (%p637) target = $region56
        $region55: #{tpu_custom_call.1} parent=51 // pred_region
          %s640 = sand.u32 %s111, 1
          %s641 = scalar_lea.sflag [#allocation6], %s640
          %s642 = sand.u32 %s111, 1
          %s643 = scalar_lea.vmem [#allocation7], %s642
          %644 = dma.done %s641, 16
        $region56: #{tpu_custom_call.1} parent=51 // pred_fallthru
          _
      $region52: #{tpu_custom_call.1} parent=5 // pred_fallthru
        _
    $region6: #{tpu_custom_call.1} parent=1 // loop_footer
      %s19 = sadd.s32 1, %s15
    $region7: #{tpu_custom_call.1} parent=1 // loop_footer_branch
      %14 = sbr.rel target = $region3
    $region8: #{tpu_custom_call.1} parent=1 // loop_exit
      _
    %645 = vsyncpa [#allocation5], 1
    %s646 = scalar_lea.sflag [#allocation5], 1
    %647 = vsyncpa %s646, 1
    %648 = vsyncpa [#allocation6], 1
    %s649 = scalar_lea.sflag [#allocation6], 1
    %650 = vsyncpa %s649, 1

</llo_original>
